<compile_context>
chip_gen: v6e
topology: v6e:2x2x1
jax: 0.10.0
libtpu: 0.0.40
codegen_flags: <defaults>
</compile_context>

<pallas_src>
import jax
import jax.numpy as jnp
from jax import lax
from jax.experimental import pallas as pl
from jax.experimental.pallas import tpu as pltpu

_GAMMA = 2.0            # the module hardcodes FocalLoss(gamma=2)
_PAD_LOGIT = -1.0e4     # padded logit: with t=0, sw=0 it contributes exactly 0 loss
_LANE = 128
_TR_MAX = 8192          # (8192,128) f32 block = 4 MiB/input; 3 inputs x 2 buffers = 24 MiB
_VMEM_LIMIT = 48 * 1024 * 1024   # <= ~48 MiB keeps headroom on v7x (64 MiB physical VMEM)


def _round_up(x, m):
    return ((x + m - 1) // m) * m


# -----------------------------------------------------------------------------
# Kernel: per-tile focal loss + partial reductions.
# Kernel args: (nrows_smem, y_true_tile, y_pred_tile, sw_tile, out_tile)
# out tile (1, 8, 128):  lane 0 = sum(loss*mask), lane 1 = sum(mask), lane 2 = sum(loss)
# (value replicated across sublanes; wrapper reads sublane 0).
# -----------------------------------------------------------------------------
def _focal_reduce_kernel(nrows_ref, yt_ref, yp_ref, sw_ref, out_ref):
    x = yp_ref[...]                                # (TR, 128) f32 logits
    t = yt_ref[...].astype(jnp.float32)            # binary targets
    s = sw_ref[...].astype(jnp.float32)            # sample weights (0/1)

    tr = x.shape[0]

    # z = x*(2t-1); for binary t, |z| == |x| so one exp/log1p serves both bce and focal.
    z = x * (t + t - 1.0)
    e = jnp.exp(-jnp.abs(x))                       # exp(-|z|)
    lse = jnp.log1p(e)                             # log(1 + exp(-|z|))

    # Stable BCE-with-logits:  max(x,0) - x*t + lse  ==  relu(-z) + lse   (binary t)
    rp = jnp.maximum(z, 0.0)
    bce = (rp - z) + lse

    # Focal factor (1 - p_t)^2 = sigmoid(-z)^2, without a second heavy EUP exp:
    #   sigmoid(-z) = (e if z >= 0 else 1) / (1 + e)
    # approx=True would shave a few more EUP cycles on v7x at ~1e-4 relative error.
    inv = pl.reciprocal(1.0 + e, approx=False)
    fs = jnp.where(z >= 0.0, e, 1.0) * inv
    loss = (fs * fs) * bce

    # Tail masking: rows beyond the true row count (partial last grid block) contain
    # garbage from the clamped DMA -- select them out (hidden under DMA on v5e/v6e).
    row = pl.program_id(0) * tr + lax.broadcasted_iota(jnp.int32, x.shape, 0)
    valid = row < nrows_ref[0]
    m = jnp.where(valid & (s > 0.0), 1.0, 0.0)     # in-kernel (sw > 0) -> no wrapper mask pass
    loss = jnp.where(valid, loss, 0.0)

    masked_sum = jnp.sum(loss * m)
    mask_cnt = jnp.sum(m)
    total_sum = jnp.sum(loss)
    # (Optional v7x squeeze per review: offload these reductions to the idle MXU via
    #  jnp.dot(tile, ones) if bundle dumps show VALU saturation.)

    lane = lax.broadcasted_iota(jnp.int32, out_ref.shape, 2)
    out_ref[...] = jnp.where(
        lane == 0, masked_sum,
        jnp.where(lane == 1, mask_cnt,
                  jnp.where(lane == 2, total_sum, 0.0)))


def _focal_partials(nrows, yt2, yp2, sw2, tr):
    rows = yp2.shape[0]
    grid = (pl.cdiv(rows, tr),)
    return pl.pallas_call(
        _focal_reduce_kernel,
        out_shape=jax.ShapeDtypeStruct((grid[0], 8, 128), jnp.float32),
        grid_spec=pltpu.PrefetchScalarGridSpec(
            num_scalar_prefetch=1,                 # nrows -> SMEM
            grid=grid,
            in_specs=[
                pl.BlockSpec((tr, _LANE), lambda i, n: (i, 0)),   # y_true tile (f32)
                pl.BlockSpec((tr, _LANE), lambda i, n: (i, 0)),   # y_pred tile (f32)
                pl.BlockSpec((tr, _LANE), lambda i, n: (i, 0)),   # sw tile     (f32)
            ],
            out_specs=pl.BlockSpec((1, 8, 128), lambda i, n: (i, 0, 0)),
        ),
        compiler_params=pltpu.CompilerParams(
            dimension_semantics=("parallel",),     # independent steps -> v7x 2-TC sharding
            vmem_limit_bytes=_VMEM_LIMIT),
    )(nrows, yt2, yp2, sw2)


# -----------------------------------------------------------------------------
# Module wrapper (mirrors focalLoss.forward) -> scalar loss
# -----------------------------------------------------------------------------
class focalLoss:
    def __call__(self, y_true, y_pred, sw):
        total = y_pred.size
        shape = y_pred.shape

        # No extra HBM pass in the common case: f32->f32 astype, broadcast of equal shapes,
        # and flatten of a contiguous array are all metadata-only.
        yp = y_pred.reshape(-1).astype(jnp.float32)
        yt = jnp.broadcast_to(y_true, shape).reshape(-1).astype(jnp.float32)
        # sw is a 0/1 sample-weight mask in this repo, so (sw > 0) == sw.byte() != 0.
        sw_f = jnp.broadcast_to(sw, shape).reshape(-1).astype(jnp.float32)

        rem = total % _LANE
        if rem:
            # Rare path (element count not a multiple of 128 lanes): pad with values whose
            # focal loss is exactly 0 (t=0, sw=0, logit=-1e4) so only row masking is needed.
            pad = _LANE - rem
            yp = jnp.concatenate([yp, jnp.full((pad,), _PAD_LOGIT, jnp.float32)])
            yt = jnp.concatenate([yt, jnp.zeros((pad,), jnp.float32)])
            sw_f = jnp.concatenate([sw_f, jnp.zeros((pad,), jnp.float32)])

        rows = yp.size // _LANE
        tr = min(_TR_MAX, _round_up(rows, 8))

        yp2 = yp.reshape(rows, _LANE)
        yt2 = yt.reshape(rows, _LANE)
        sw2 = sw_f.reshape(rows, _LANE)
        nrows = jnp.array([rows], jnp.int32)

        partials = _focal_partials(nrows, yt2, yp2, sw2, tr)      # (G, 8, 128)
        sums = jnp.sum(partials[:, 0, :], axis=0)                 # f32 partial combine (tiny)
        masked_sum, mask_cnt, total_sum = sums[0], sums[1], sums[2]

        # torch: if (sw > 0).any(): mean(masked_select(costs, sw)) else: mean(costs)
        return jnp.where(mask_cnt > 0.0,
                         masked_sum / jnp.maximum(mask_cnt, 1.0),
                         total_sum / jnp.float32(total))


# -----------------------------------------------------------------------------
# Pure-JAX reference (literal PyTorch math)
# -----------------------------------------------------------------------------
def _reference(y_true, y_pred, sw, gamma=2.0):
    x = y_pred.astype(jnp.float32)
    t = y_true.astype(jnp.float32)
    max_val = jnp.clip(-x, 0.0, None)
    bce = x - x * t + max_val + jnp.log(jnp.exp(-max_val) + jnp.exp(-x - max_val))
    invprobs = jax.nn.log_sigmoid(-x * (t * 2.0 - 1.0))
    costs = jnp.exp(invprobs * gamma) * bce
    mask = jnp.broadcast_to(sw, costs.shape) > 0
    if bool(jnp.any(mask)):
        return jnp.mean(costs[mask])
    return jnp.mean(costs)


if __name__ == "__main__":
    key = jax.random.PRNGKey(0)
    k1, k2, k3 = jax.random.split(key, 3)

    loss_fn = focalLoss()

    # Main test: lane-aligned shape (common path, no padding).
    B, C, H, W = 2, 4, 16, 16
    y_pred = jax.random.normal(k1, (B, C, H, W), jnp.float32)                  # logits
    y_true = (jax.random.uniform(k2, (B, C, H, W)) > 0.5).astype(jnp.float32)  # binary mask
    sw = (jax.random.uniform(k3, (B, C, H, W)) > 0.3).astype(jnp.float32)      # 0/1 weights

    out = jax.block_until_ready(loss_fn(y_true, y_pred, sw))
    ref = _reference(y_true, y_pred, sw)
    assert out.shape == ref.shape, (out.shape, ref.shape)
    assert bool(jnp.allclose(out, ref, atol=1e-5, rtol=1e-4)), (float(out), float(ref))

    # All-zero sample weights -> torch else-branch (plain mean over all costs).
    sw0 = jnp.zeros_like(sw)
    out0 = jax.block_until_ready(loss_fn(y_true, y_pred, sw0))
    ref0 = _reference(y_true, y_pred, sw0)
    assert bool(jnp.allclose(out0, ref0, atol=1e-5, rtol=1e-4)), (float(out0), float(ref0))

    # Odd shape: exercises the 128-pad fallback AND the partial-last-block row masking.
    k4, k5, k6 = jax.random.split(jax.random.PRNGKey(1), 3)
    shp = (3, 5, 11, 13)
    yp_o = jax.random.normal(k4, shp, jnp.float32)
    yt_o = (jax.random.uniform(k5, shp) > 0.5).astype(jnp.float32)
    sw_o = (jax.random.uniform(k6, shp) > 0.3).astype(jnp.float32)
    out_o = jax.block_until_ready(loss_fn(yt_o, yp_o, sw_o))
    ref_o = _reference(yt_o, yp_o, sw_o)
    assert bool(jnp.allclose(out_o, ref_o, atol=1e-5, rtol=1e-4)), (float(out_o), float(ref_o))

    print("KERNEL_OK")
</pallas_src>

<mosaic_0001>
module attributes {stable_mosaic.version = 11 : i64} {
  func.func @_focal_reduce_kernel(%arg0: i32, %arg1: memref<1xi32, #tpu.memory_space<smem>>, %arg2: memref<16x128xf32, #tpu.memory_space<vmem>>, %arg3: memref<16x128xf32, #tpu.memory_space<vmem>>, %arg4: memref<16x128xf32, #tpu.memory_space<vmem>>, %arg5: memref<1x8x128xf32, #tpu.memory_space<vmem>>) attributes {dimension_semantics = [#tpu.dimension_semantics<parallel>], iteration_bounds = array<i64: 1>, scalar_prefetch = 1 : i64, scratch_operands = 0 : i64, tpu.core_type = #tpu.core_type<tc>, window_params = [{transform_indices = @transform_0, window_bounds = array<i64: 16, 128>}, {transform_indices = @transform_1, window_bounds = array<i64: 16, 128>}, {transform_indices = @transform_2, window_bounds = array<i64: 16, 128>}, {transform_indices = @transform_3, window_bounds = array<i64: 1, 8, 128>}]} {
    %c0 = arith.constant 0 : index
    %c0_0 = arith.constant 0 : index
    %0 = vector.load %arg3[%c0, %c0_0] : memref<16x128xf32, #tpu.memory_space<vmem>>, vector<16x128xf32>
    %c0_1 = arith.constant 0 : index
    %c0_2 = arith.constant 0 : index
    %1 = vector.load %arg2[%c0_1, %c0_2] : memref<16x128xf32, #tpu.memory_space<vmem>>, vector<16x128xf32>
    %c0_3 = arith.constant 0 : index
    %c0_4 = arith.constant 0 : index
    %2 = vector.load %arg4[%c0_3, %c0_4] : memref<16x128xf32, #tpu.memory_space<vmem>>, vector<16x128xf32>
    %3 = arith.addf %1, %1 : vector<16x128xf32>
    %cst = arith.constant 1.000000e+00 : f32
    %4 = vector.broadcast %cst : f32 to vector<16x128xf32>
    %5 = arith.subf %3, %4 : vector<16x128xf32>
    %6 = arith.mulf %0, %5 : vector<16x128xf32>
    %7 = math.absf %0 : vector<16x128xf32>
    %cst_5 = arith.constant 0.000000e+00 : f32
    %8 = vector.broadcast %cst_5 : f32 to vector<16x128xf32>
    %9 = arith.subf %8, %7 : vector<16x128xf32>
    %10 = math.exp %9 : vector<16x128xf32>
    %11 = math.log1p %10 : vector<16x128xf32>
    %cst_6 = arith.constant 0.000000e+00 : f32
    %12 = vector.broadcast %cst_6 : f32 to vector<16x128xf32>
    %13 = arith.maximumf %6, %12 : vector<16x128xf32>
    %14 = arith.subf %13, %6 : vector<16x128xf32>
    %15 = arith.addf %14, %11 : vector<16x128xf32>
    %cst_7 = arith.constant 1.000000e+00 : f32
    %16 = vector.broadcast %cst_7 : f32 to vector<16x128xf32>
    %17 = arith.addf %16, %10 : vector<16x128xf32>
    %18 = tpu.reciprocal %17 : vector<16x128xf32> -> vector<16x128xf32>
    %cst_8 = arith.constant 0.000000e+00 : f32
    %19 = vector.broadcast %cst_8 : f32 to vector<16x128xf32>
    %20 = arith.cmpf oge, %6, %19 : vector<16x128xf32>
    %cst_9 = arith.constant 1.000000e+00 : f32
    %21 = vector.broadcast %cst_9 : f32 to vector<16x128xf32>
    %22 = arith.select %20, %10, %21 : vector<16x128xi1>, vector<16x128xf32>
    %23 = arith.mulf %22, %18 : vector<16x128xf32>
    %24 = arith.mulf %23, %23 : vector<16x128xf32>
    %25 = arith.mulf %24, %15 : vector<16x128xf32>
    %c16_i32 = arith.constant 16 : i32
    %26 = arith.muli %arg0, %c16_i32 : i32
    %27 = tpu.iota {dimensions = array<i32: 0>} : vector<16x128xi32>
    %28 = vector.broadcast %26 : i32 to vector<16x128xi32>
    %29 = arith.addi %28, %27 : vector<16x128xi32>
    %c0_10 = arith.constant 0 : index
    %30 = memref.load %arg1[%c0_10] : memref<1xi32, #tpu.memory_space<smem>>
    %31 = vector.broadcast %30 : i32 to vector<16x128xi32>
    %32 = arith.cmpi slt, %29, %31 : vector<16x128xi32>
    %cst_11 = arith.constant 0.000000e+00 : f32
    %33 = vector.broadcast %cst_11 : f32 to vector<16x128xf32>
    %34 = arith.cmpf ogt, %2, %33 : vector<16x128xf32>
    %35 = arith.andi %32, %34 : vector<16x128xi1>
    %cst_12 = arith.constant 1.000000e+00 : f32
    %cst_13 = arith.constant 0.000000e+00 : f32
    %36 = vector.broadcast %cst_12 : f32 to vector<16x128xf32>
    %37 = vector.broadcast %cst_13 : f32 to vector<16x128xf32>
    %38 = arith.select %35, %36, %37 : vector<16x128xi1>, vector<16x128xf32>
    %cst_14 = arith.constant 0.000000e+00 : f32
    %39 = vector.broadcast %cst_14 : f32 to vector<16x128xf32>
    %40 = arith.select %32, %25, %39 : vector<16x128xi1>, vector<16x128xf32>
    %41 = arith.mulf %40, %38 : vector<16x128xf32>
    %42 = vector.shape_cast %41 : vector<16x128xf32> to vector<1x16x128xf32>
    %cst_15 = arith.constant dense<0.000000e+00> : vector<1xf32>
    %43 = vector.multi_reduction <add>, %42, %cst_15 [1, 2] : vector<1x16x128xf32> to vector<1xf32>
    %44 = vector.shape_cast %43 : vector<1xf32> to vector<1x1x1xf32>
    %45 = vector.extract %44[0, 0, 0] : f32 from vector<1x1x1xf32>
    %46 = vector.shape_cast %38 : vector<16x128xf32> to vector<1x16x128xf32>
    %cst_16 = arith.constant dense<0.000000e+00> : vector<1xf32>
    %47 = vector.multi_reduction <add>, %46, %cst_16 [1, 2] : vector<1x16x128xf32> to vector<1xf32>
    %48 = vector.shape_cast %47 : vector<1xf32> to vector<1x1x1xf32>
    %49 = vector.extract %48[0, 0, 0] : f32 from vector<1x1x1xf32>
    %50 = vector.shape_cast %40 : vector<16x128xf32> to vector<1x16x128xf32>
    %cst_17 = arith.constant dense<0.000000e+00> : vector<1xf32>
    %51 = vector.multi_reduction <add>, %50, %cst_17 [1, 2] : vector<1x16x128xf32> to vector<1xf32>
    %52 = vector.shape_cast %51 : vector<1xf32> to vector<1x1x1xf32>
    %53 = vector.extract %52[0, 0, 0] : f32 from vector<1x1x1xf32>
    %54 = tpu.iota {dimensions = array<i32: 2>} : vector<1x8x128xi32>
    %c0_i32 = arith.constant 0 : i32
    %55 = vector.broadcast %c0_i32 : i32 to vector<1x8x128xi32>
    %56 = arith.cmpi eq, %54, %55 : vector<1x8x128xi32>
    %c1_i32 = arith.constant 1 : i32
    %57 = vector.broadcast %c1_i32 : i32 to vector<1x8x128xi32>
    %58 = arith.cmpi eq, %54, %57 : vector<1x8x128xi32>
    %c2_i32 = arith.constant 2 : i32
    %59 = vector.broadcast %c2_i32 : i32 to vector<1x8x128xi32>
    %60 = arith.cmpi eq, %54, %59 : vector<1x8x128xi32>
    %cst_18 = arith.constant 0.000000e+00 : f32
    %61 = vector.broadcast %53 : f32 to vector<1x8x128xf32>
    %62 = vector.broadcast %cst_18 : f32 to vector<1x8x128xf32>
    %63 = arith.select %60, %61, %62 : vector<1x8x128xi1>, vector<1x8x128xf32>
    %64 = vector.broadcast %49 : f32 to vector<1x8x128xf32>
    %65 = arith.select %58, %64, %63 : vector<1x8x128xi1>, vector<1x8x128xf32>
    %66 = vector.broadcast %45 : f32 to vector<1x8x128xf32>
    %67 = arith.select %56, %66, %65 : vector<1x8x128xi1>, vector<1x8x128xf32>
    %c0_19 = arith.constant 0 : index
    %c0_20 = arith.constant 0 : index
    %c0_21 = arith.constant 0 : index
    %68 = vector.load %arg5[%c0_19, %c0_20, %c0_21] : memref<1x8x128xf32, #tpu.memory_space<vmem>>, vector<1x8x128xf32>
    tpu.vector_store %arg5[%c0_19, %c0_20, %c0_21], %67 {strides = array<i32>} : memref<1x8x128xf32, #tpu.memory_space<vmem>>, vector<1x8x128xf32>,
    return
  }
  func.func @transform_0(%arg0: i32, %arg1: memref<1xi32, #tpu.memory_space<smem>>) -> (i32, i32) {
    %c0_i32 = arith.constant 0 : i32
    %c0_i32_0 = arith.constant 0 : i32
    return %arg0, %c0_i32 : i32, i32
  }
  func.func @transform_1(%arg0: i32, %arg1: memref<1xi32, #tpu.memory_space<smem>>) -> (i32, i32) {
    %c0_i32 = arith.constant 0 : i32
    %c0_i32_0 = arith.constant 0 : i32
    return %arg0, %c0_i32 : i32, i32
  }
  func.func @transform_2(%arg0: i32, %arg1: memref<1xi32, #tpu.memory_space<smem>>) -> (i32, i32) {
    %c0_i32 = arith.constant 0 : i32
    %c0_i32_0 = arith.constant 0 : i32
    return %arg0, %c0_i32 : i32, i32
  }
  func.func @transform_3(%arg0: i32, %arg1: memref<1xi32, #tpu.memory_space<smem>>) -> (i32, i32, i32) {
    %c0_i32 = arith.constant 0 : i32
    %c0_i32_0 = arith.constant 0 : i32
    %c0_i32_1 = arith.constant 0 : i32
    return %arg0, %c0_i32, %c0_i32_0 : i32, i32, i32
  }
}

</mosaic_0001>

<llo_original>
// kernel: tpu_custom_call.1
$region0: #{tpu_custom_call.1}
  #allocation0 [shape = 'u32[]', space=smem, size = 0x4, offset = 0x4, fixed_abs, tag = 'smem constant byte address 0x4 - core index']
  #allocation1 [shape = 'u32[144,128]{1,0:T(1,128)}', space=vmem, size = 0x12000, scoped, tag = 'internal scratch']
  #allocation2 [shape = 's32[1]{0}', space=sflag, size = 0x4, scoped, tag = 'scoped memory for tpu_custom_call.1']
  #allocation3 [shape = 's32[1]{0:T(128)S(6)}', space=smem, size = 0x200, scoped, tag = 'prefetched SMEM operand 0']
  %s0 = inlined_call_operand.<no memory space> [shape: s32[1], index: 0, kind: input, shape index: {}]
  %s1 = inlined_call_operand.hbm [shape: f32[16,128], index: 1, kind: input, shape index: {}]
  %s2 = inlined_call_operand.hbm [shape: f32[16,128], index: 2, kind: input, shape index: {}]
  %s3 = inlined_call_operand.hbm [shape: f32[16,128], index: 3, kind: input, shape index: {}]
  %s4 = inlined_call_operand.hbm [shape: f32[1,8,128], index: 4, kind: output, shape index: {}]
  %s5 = sld [smem:[#allocation0]]
  $region34: #{tpu_custom_call.1} parent=0
    _
  %s7 = ssub.s32 1, %s5
  %s8 = scalar_select 0, %s7, %s5
  %9 = sst [smem:[#allocation3]] %s0
  $region1: #{tpu_custom_call.1} parent=0
    #allocation4 [shape = 'u8[8192]{0}', space=vmem, size = 0x2000, scoped, tag = 'input window, operand 1, single buffered']
    #allocation5 [shape = 's32[1]{0}', space=sflag, size = 0x4, scoped, tag = 'scoped memory for tpu_custom_call.1']
    #allocation6 [shape = 's32[1]{0}', space=sflag, size = 0x4, scoped, tag = 'scoped memory for tpu_custom_call.1']
    #allocation7 [shape = 'u8[8192]{0}', space=vmem, size = 0x2000, scoped, tag = 'input window, operand 2, single buffered']
    #allocation8 [shape = 's32[1]{0}', space=sflag, size = 0x4, scoped, tag = 'scoped memory for tpu_custom_call.1']
    #allocation9 [shape = 'u8[8192]{0}', space=vmem, size = 0x2000, scoped, tag = 'input window, operand 3, single buffered']
    #allocation10 [shape = 'u8[4096]{0}', space=vmem, size = 0x1000, scoped, tag = 'output window, operand 0, single buffered']
    %10 = vsyncpa [#allocation5], 0
    %11 = vsyncpa [#allocation8], 0
    %12 = vsyncpa [#allocation6], 0
    // Predicated region
    $region2: #{tpu_custom_call.1} parent=1 // pred_check
      _
    $region3: #{tpu_custom_call.1} parent=1 // pred_check_branch
      %14 = sbr.rel (0) target = $region5
    $region4: #{tpu_custom_call.1} parent=1 // pred_region
      %s16 = ssub.s32 256, 256
      %17 = vsyncadd [#allocation5], %s16
      %s18 = sshll.u32 [#allocation4], 4
      %s19 = int_to_ptr.vmem [resolvable:$true] %s18
      %24 = dma.hbm_to_vmem [thread:$0]  %s1, 256, %s19, [#allocation5], 128, 128, 8
    $region5: #{tpu_custom_call.1} parent=1 // pred_fallthru
      _
    // Predicated region
    $region6: #{tpu_custom_call.1} parent=1 // pred_check
      _
    $region7: #{tpu_custom_call.1} parent=1 // pred_check_branch
      %26 = sbr.rel (0) target = $region9
    $region8: #{tpu_custom_call.1} parent=1 // pred_region
      %s28 = ssub.s32 256, 256
      %29 = vsyncadd [#allocation8], %s28
      %s30 = sshll.u32 [#allocation7], 4
      %s31 = int_to_ptr.vmem [resolvable:$true] %s30
      %36 = dma.hbm_to_vmem [thread:$0]  %s2, 256, %s31, [#allocation8], 128, 128, 8
    $region9: #{tpu_custom_call.1} parent=1 // pred_fallthru
      _
    // Predicated region
    $region10: #{tpu_custom_call.1} parent=1 // pred_check
      _
    $region11: #{tpu_custom_call.1} parent=1 // pred_check_branch
      %38 = sbr.rel (0) target = $region13
    $region12: #{tpu_custom_call.1} parent=1 // pred_region
      %s40 = ssub.s32 256, 256
      %41 = vsyncadd [#allocation8], %s40
      %s42 = sshll.u32 [#allocation9], 4
      %s43 = int_to_ptr.vmem [resolvable:$true] %s42
      %48 = dma.hbm_to_vmem [thread:$0]  %s3, 256, %s43, [#allocation8], 128, 128, 8
    $region13: #{tpu_custom_call.1} parent=1 // pred_fallthru
      _
    // Predicated region
    $region14: #{tpu_custom_call.1} parent=1 // pred_check
      _
    $region15: #{tpu_custom_call.1} parent=1 // pred_check_branch
      %50 = sbr.rel (0) target = $region17
    $region16: #{tpu_custom_call.1} parent=1 // pred_region
      %51 = dma.done [#allocation5], 256
    $region17: #{tpu_custom_call.1} parent=1 // pred_fallthru
      _
    // Predicated region
    $region18: #{tpu_custom_call.1} parent=1 // pred_check
      _
    $region19: #{tpu_custom_call.1} parent=1 // pred_check_branch
      %53 = sbr.rel (0) target = $region21
    $region20: #{tpu_custom_call.1} parent=1 // pred_region
      %54 = dma.done [#allocation8], 256
    $region21: #{tpu_custom_call.1} parent=1 // pred_fallthru
      _
    // Predicated region
    $region22: #{tpu_custom_call.1} parent=1 // pred_check
      _
    $region23: #{tpu_custom_call.1} parent=1 // pred_check_branch
      %56 = sbr.rel (0) target = $region25
    $region24: #{tpu_custom_call.1} parent=1 // pred_region
      %57 = dma.done [#allocation8], 256
    $region25: #{tpu_custom_call.1} parent=1 // pred_fallthru
      _
    %v58 = vld [vmem:[#allocation7] sm:$0xff]
    %v59 = vld [vmem:[#allocation7 + $0x8] sm:$0xff]
    %v60 = vld [vmem:[#allocation4] sm:$0xff]
    %v61 = vld [vmem:[#allocation4 + $0x8] sm:$0xff]
    %v62 = vld [vmem:[#allocation9] sm:$0xff]
    %v63 = vld [vmem:[#allocation9 + $0x8] sm:$0xff]
    %v64 = vadd.f32 %v60, %v60
    %v65 = vadd.f32 %v61, %v61
    %v66 = vsub.f32 %v64, 1.0
    %v67 = vsub.f32 %v65, 1.0
    %v68 = vmul.f32 %v58, %v66
    %v69 = vmul.f32 %v59, %v67
    %v70 = vand.u32 2147483647, %v58
    %v71 = vand.u32 2147483647, %v59
    %v72 = vsub.f32 0.0, %v70
    %v73 = vsub.f32 0.0, %v71
    %v74 = vmul.f32 %v72, 1.442695
    %v75 = vpow.pop %v74
    %v76 = vmul.f32 %v73, 1.442695
    %v77 = vpow.pop %v76
    %v78 = vadd.f32 %v75, 1.0
    %v79 = vlog2.pop %v78
    %v80 = vmul.f32 %v79, 0.6931472
    %v81 = vmul.f32 -0.5, %v75
    %v82 = vadd.f32 %v81, 1.0
    %v83 = vmul.f32 %v82, %v75
    %v84 = vand.u32 2147483647, %v75
    %vm85 = vcmp.lt.f32.partialorder %v84, 0.0004427343
    %v86 = vsel %vm85, %v83, %v80
    %v87 = vadd.f32 %v77, 1.0
    %v88 = vlog2.pop %v87
    %v89 = vmul.f32 %v88, 0.6931472
    %v90 = vmul.f32 -0.5, %v77
    %v91 = vadd.f32 %v90, 1.0
    %v92 = vmul.f32 %v91, %v77
    %v93 = vand.u32 2147483647, %v77
    %vm94 = vcmp.lt.f32.partialorder %v93, 0.0004427343
    %v95 = vsel %vm94, %v92, %v89
    %v96 = vmax.f32 %v68, 0.0
    %v97 = vmax.f32 %v69, 0.0
    %v98 = vsub.f32 %v96, %v68
    %v99 = vsub.f32 %v97, %v69
    %v100 = vadd.f32 %v98, %v86
    %v101 = vadd.f32 %v99, %v95
    %v102 = vadd.f32 %v75, 1.0
    %v103 = vadd.f32 %v77, 1.0
    %v104 = vrcp.pop %v102
    %v105 = vrcp.pop %v103
    %vm106 = vcmp.ge.f32.partialorder %v68, 0.0
    %vm107 = vcmp.ge.f32.partialorder %v69, 0.0
    %v108 = vsel %vm106, %v75, 1.0
    %v109 = vsel %vm107, %v77, 1.0
    %v110 = vmul.f32 %v108, %v104
    %v111 = vmul.f32 %v109, %v105
    %v112 = vmul.f32 %v110, %v110
    %v113 = vmul.f32 %v111, %v111
    %v114 = vmul.f32 %v112, %v100
    %v115 = vmul.f32 %v113, %v101
    %s116 = smul.u32 0, 16
    %v117 = vlaneseq
    %v118 = vshrl.u32 %v117, 7
    %v119 = vadd.s32 %v118, 8
    %v120 = vstv %s116
    %v121 = vadd.s32 %v120, %v118
    %v122 = vadd.s32 %v120, %v119
    %s123 = sld [smem:[#allocation3]]
    %v124 = vstv %s123
    %vm125 = vcmp.lt.s32.totalorder %v121, %v124
    %vm126 = vcmp.lt.s32.totalorder %v122, %v124
    %vm127 = vcmp.gt.f32.partialorder %v62, 0.0
    %vm128 = vcmp.gt.f32.partialorder %v63, 0.0
    %vm129 = vmand %vm125, %vm127
    %vm130 = vmand %vm126, %vm128
    %v131 = vsel %vm129, 1.0, 0.0
    %v132 = vsel %vm130, 1.0, 0.0
    %v133 = vsel %vm125, %v114, 0.0
    %v134 = vsel %vm126, %v115, 0.0
    %v135 = vmul.f32 %v133, %v131
    %v136 = vmul.f32 %v134, %v132
    %v137 = vadd.f32 %v135, %v136
    %138 = vadd.xlane.f32.xlu0 %v137
    %v139 = vpop.xlane.xlu0 %138
    %v140 = vrot.slane %v139, 4
    %v141 = vadd.f32 %v139, %v140
    %v142 = vrot.slane %v141, 2
    %v143 = vadd.f32 %v141, %v142
    %v144 = vrot.slane %v143, 1
    %v145 = vadd.f32 %v143, %v144
    %s146 = vtos %v145
    %v147 = vadd.f32 %v131, %v132
    %148 = vadd.xlane.f32.xlu0 %v147
    %v149 = vpop.xlane.xlu0 %148
    %v150 = vrot.slane %v149, 4
    %v151 = vadd.f32 %v149, %v150
    %v152 = vrot.slane %v151, 2
    %v153 = vadd.f32 %v151, %v152
    %v154 = vrot.slane %v153, 1
    %v155 = vadd.f32 %v153, %v154
    %s156 = vtos %v155
    %v157 = vadd.f32 %v133, %v134
    %158 = vadd.xlane.f32.xlu0 %v157
    %v159 = vpop.xlane.xlu0 %158
    %v160 = vrot.slane %v159, 4
    %v161 = vadd.f32 %v159, %v160
    %v162 = vrot.slane %v161, 2
    %v163 = vadd.f32 %v161, %v162
    %v164 = vrot.slane %v163, 1
    %v165 = vadd.f32 %v163, %v164
    %s166 = vtos %v165
    %v167 = vlaneseq
    %v168 = vand.u32 %v167, 127
    %vm169 = vcmp.eq.s32.totalorder %v168, 0
    %vm170 = vcmp.eq.s32.totalorder %v168, 1
    %vm171 = vcmp.eq.s32.totalorder %v168, 2
    %v172 = vstv %s166
    %v173 = vsel %vm171, %v172, 0.0
    %v174 = vstv %s156
    %v175 = vsel %vm170, %v174, %v173
    %v176 = vstv %s146
    %v177 = vsel %vm169, %v176, %v175
    %178 = vst [vmem:[#allocation10] sm:$0xff] %v177
    // Predicated region
    $region26: #{tpu_custom_call.1} parent=1 // pred_check
      _
    $region27: #{tpu_custom_call.1} parent=1 // pred_check_branch
      %180 = sbr.rel (0) target = $region29
    $region28: #{tpu_custom_call.1} parent=1 // pred_region
      %s182 = ssub.s32 128, 128
      %183 = vsyncadd [#allocation6], %s182
      %s185 = sshll.u32 [#allocation10], 4
      %s186 = int_to_ptr.vmem [resolvable:$true] %s185
      %188 = dma.vmem_to_hbm [thread:$0]  %s186, 128, %s4, [#allocation6]
    $region29: #{tpu_custom_call.1} parent=1 // pred_fallthru
      _
    // Predicated region
    $region30: #{tpu_custom_call.1} parent=1 // pred_check
      _
    $region31: #{tpu_custom_call.1} parent=1 // pred_check_branch
      %190 = sbr.rel (0) target = $region33
    $region32: #{tpu_custom_call.1} parent=1 // pred_region
      %191 = dma.done [#allocation6], 128
    $region33: #{tpu_custom_call.1} parent=1 // pred_fallthru
      _
    %192 = vsyncpa [#allocation5], 1
    %193 = vsyncpa [#allocation8], 1
    %194 = vsyncpa [#allocation6], 1

</llo_original>
